<compile_context>
chip_gen: v6e
topology: v6e:2x2x1
jax: 0.10.0
libtpu: 0.0.40
codegen_flags: <defaults>
</compile_context>

<pallas_src>
import jax
import jax.numpy as jnp
from jax.experimental import pallas as pl
from jax.experimental.pallas import tpu as pltpu

_LANE = 128
_SUBLANE = 8
# Above this total size, the whole-array single-block form stops being safe /
# optimal (no pipelining, must fit VMEM in one shot; v7x has 64 MiB physical,
# 32 MiB default scoped).  Conservative across v5e / v6e / v7x.
_WHOLE_ARRAY_BYTES_LIMIT = 8 * 1024 * 1024
# Per-tile byte budget for the gridded fallback: in + out double-buffered
# stays well under the 32 MiB default scoped VMEM even on v7x.
_TILE_BYTES_BUDGET = 4 * 1024 * 1024


def _identity_copy_kernel(x_ref, o_ref):
    """Pass-through forward: o = x (whole-block VMEM copy)."""
    o_ref[...] = x_ref[...]


def _whole_array_identity(x):
    """Single ungridded call: the entire array is one VMEM block (aliased)."""
    return pl.pallas_call(
        _identity_copy_kernel,
        out_shape=jax.ShapeDtypeStruct(x.shape, x.dtype),
        in_specs=[pl.BlockSpec(memory_space=pltpu.MemorySpace.VMEM)],
        out_specs=pl.BlockSpec(memory_space=pltpu.MemorySpace.VMEM),
        input_output_aliases={0: 0},  # output buffer == input buffer
    )(x)


def _pick_tile_rows(n_rows, feat, itemsize):
    """Largest multiple-of-8 row tile that fits the per-tile VMEM budget."""
    rows = max(1, _TILE_BYTES_BUDGET // max(1, feat * itemsize))
    rows = max(_SUBLANE, (rows // _SUBLANE) * _SUBLANE)
    rows = min(rows, n_rows)
    if rows != n_rows and rows % _SUBLANE != 0:
        rows = _SUBLANE
    return rows


def _gridded_identity(x2d):
    """1-D parallel grid over rows; large lane-dense tiles, aliased output."""
    n_rows, feat = x2d.shape
    tile_rows = _pick_tile_rows(n_rows, feat, x2d.dtype.itemsize)
    grid = (pl.cdiv(n_rows, tile_rows),)
    return pl.pallas_call(
        _identity_copy_kernel,
        out_shape=jax.ShapeDtypeStruct((n_rows, feat), x2d.dtype),
        grid_spec=pltpu.PrefetchScalarGridSpec(
            num_scalar_prefetch=0,
            grid=grid,
            in_specs=[pl.BlockSpec((tile_rows, feat), lambda i: (i, 0))],
            out_specs=pl.BlockSpec((tile_rows, feat), lambda i: (i, 0)),
        ),
        input_output_aliases={0: 0},
        compiler_params=pltpu.CompilerParams(
            dimension_semantics=("parallel",)),
    )(x2d)


def base_torch_model_forward(x: jax.Array, config: dict,
                             *, short_circuit: bool = False) -> jax.Array:
    """Pallas equivalent of BaseTorchModel.forward (identity placeholder).

    x: [B, ...] (e.g. NCHW). Returns an array of identical shape/dtype.
    `config` is carried for parity with the PyTorch module (num_classes is
    available but unused since the base forward defines no head).

    short_circuit=True returns x directly -- the zero-overhead form of an
    abstract no-op forward (no launch, no DMA).  The default exercises the
    Pallas placeholder path so subclasses inherit a working kernel skeleton.
    """
    if short_circuit:
        return x

    orig_shape = x.shape
    batch = orig_shape[0] if len(orig_shape) >= 1 else 1
    feat = 1
    for d in orig_shape[1:]:
        feat *= d
    total_bytes = x.size * x.dtype.itemsize

    lane_dense = (len(orig_shape) >= 2) and (feat % _LANE == 0)

    if lane_dense:
        x2d = x.reshape(batch, feat)
        if total_bytes > _WHOLE_ARRAY_BYTES_LIMIT:
            out2d = _gridded_identity(x2d)
        else:
            out2d = _whole_array_identity(x2d)
        return out2d.reshape(orig_shape)

    # Non-lane-dense feature dim: keep the original shape as a full-array
    # block (full dims are always legal) instead of masked partial stores.
    # TODO(synk): pad the last dim to a multiple of 128 (and grid) once a
    #             concrete subclass makes this a large, hot path.
    return _whole_array_identity(x)


class BaseModelPallas:
    """Mirror of BaseTorchModel: holds config, exposes num_classes."""

    def __init__(self, config):
        self._config = config

    @property
    def num_classes(self) -> int:
        return self._config["network"]["num_classes"]

    def forward(self, x: jax.Array, *, short_circuit: bool = False) -> jax.Array:
        return base_torch_model_forward(x, self._config,
                                        short_circuit=short_circuit)

    def summary(self) -> None:
        # No trainable parameters in the abstract base model.
        print("Trainable parameters: 0")


if __name__ == "__main__":
    config = {"network": {"num_classes": 10}}
    model = BaseModelPallas(config)

    key = jax.random.PRNGKey(0)
    # Small NCHW input consistent with a vision-style forward: B=2, C=4, 16x16.
    x = jax.random.normal(key, (2, 4, 16, 16), dtype=jnp.float32)

    # Exercised Pallas placeholder path (whole-array aliased identity).
    y = model.forward(x)
    y = jax.block_until_ready(y)

    # Zero-overhead short-circuit path (the recommended production form of an
    # abstract no-op forward).
    y_fast = model.forward(x, short_circuit=True)

    # Sanity: base forward is a pass-through, so output must be bit-exact.
    assert y.shape == x.shape and y.dtype == x.dtype
    assert bool(jnp.array_equal(y, x))
    assert bool(jnp.array_equal(y_fast, x))
    print("KERNEL_OK")
</pallas_src>

<mosaic_0001>
module attributes {stable_mosaic.version = 11 : i64} {
  func.func @_identity_copy_kernel(%arg0: memref<2x1024xf32, #tpu.memory_space<vmem>>, %arg1: memref<2x1024xf32, #tpu.memory_space<vmem>>) attributes {dimension_semantics = [], scalar_prefetch = 0 : i64, scratch_operands = 0 : i64, tpu.core_type = #tpu.core_type<tc>} {
    %c0 = arith.constant 0 : index
    %c0_0 = arith.constant 0 : index
    %0 = vector.load %arg0[%c0, %c0_0] : memref<2x1024xf32, #tpu.memory_space<vmem>>, vector<2x1024xf32>
    %c0_1 = arith.constant 0 : index
    %c0_2 = arith.constant 0 : index
    %1 = vector.load %arg1[%c0_1, %c0_2] : memref<2x1024xf32, #tpu.memory_space<vmem>>, vector<2x1024xf32>
    tpu.vector_store %arg1[%c0_1, %c0_2], %0 {strides = array<i32>} : memref<2x1024xf32, #tpu.memory_space<vmem>>, vector<2x1024xf32>,
    return
  }
}

</mosaic_0001>

<llo_original>
// kernel: tpu_custom_call.1
$region0: #{tpu_custom_call.1}
  #allocation0 [shape = 'u32[]', space=smem, size = 0x4, offset = 0x4, fixed_abs, tag = 'smem constant byte address 0x4 - core index']
  #allocation1 [shape = 'u32[144,128]{1,0:T(1,128)}', space=vmem, size = 0x12000, scoped, tag = 'internal scratch']
  %s0 = inlined_call_operand.hbm [shape: f32[2,1024], index: 0, kind: input, shape index: {}, may-alias: {0,1}]
  %s1 = inlined_call_operand.hbm [shape: f32[2,1024], index: 1, kind: output, shape index: {}, may-alias: {0,1}]
  %s2 = sld [smem:[#allocation0]]
  $region18: #{tpu_custom_call.1} parent=0
    _
  %s4 = ssub.s32 1, %s2
  %s5 = scalar_select 0, %s4, %s2
  $region1: #{tpu_custom_call.1} parent=0
    #allocation2 [shape = 'u8[8192]{0}', space=vmem, size = 0x2000, scoped, tag = 'input window, operand 0, single buffered']
    #allocation3 [shape = 's32[1]{0}', space=sflag, size = 0x4, scoped, tag = 'scoped memory for tpu_custom_call.1']
    #allocation4 [shape = 's32[1]{0}', space=sflag, size = 0x4, scoped, tag = 'scoped memory for tpu_custom_call.1']
    #allocation5 [shape = 'u8[8192]{0}', space=vmem, size = 0x2000, scoped, tag = 'output window, operand 0, single buffered']
    %6 = vsyncpa [#allocation3], 0
    %7 = vsyncpa [#allocation4], 0
    // Predicated region
    $region2: #{tpu_custom_call.1} parent=1 // pred_check
      _
    $region3: #{tpu_custom_call.1} parent=1 // pred_check_branch
      %9 = sbr.rel (0) target = $region5
    $region4: #{tpu_custom_call.1} parent=1 // pred_region
      %s11 = ssub.s32 256, 256
      %12 = vsyncadd [#allocation3], %s11
      %s14 = sshll.u32 [#allocation2], 4
      %s15 = int_to_ptr.vmem [resolvable:$true] %s14
      %17 = dma.hbm_to_vmem [thread:$0]  %s0, 256, %s15, [#allocation3]
    $region5: #{tpu_custom_call.1} parent=1 // pred_fallthru
      _
    // Predicated region
    $region6: #{tpu_custom_call.1} parent=1 // pred_check
      _
    $region7: #{tpu_custom_call.1} parent=1 // pred_check_branch
      %19 = sbr.rel (0) target = $region9
    $region8: #{tpu_custom_call.1} parent=1 // pred_region
      %20 = dma.done [#allocation3], 256
    $region9: #{tpu_custom_call.1} parent=1 // pred_fallthru
      _
    %v21 = vld [vmem:[#allocation2] sm:$0xff]
    %v22 = vld [vmem:[#allocation2 + $0x8] sm:$0xff]
    %23 = vst [vmem:[#allocation5] sm:$0xff] %v21
    %24 = vst [vmem:[#allocation5 + $0x8] sm:$0xff] %v22
    // Predicated region
    $region10: #{tpu_custom_call.1} parent=1 // pred_check
      _
    $region11: #{tpu_custom_call.1} parent=1 // pred_check_branch
      %26 = sbr.rel (0) target = $region13
    $region12: #{tpu_custom_call.1} parent=1 // pred_region
      %s28 = ssub.s32 256, 256
      %29 = vsyncadd [#allocation4], %s28
      %s31 = sshll.u32 [#allocation5], 4
      %s32 = int_to_ptr.vmem [resolvable:$true] %s31
      %34 = dma.vmem_to_hbm [thread:$0]  %s32, 256, %s1, [#allocation4]
    $region13: #{tpu_custom_call.1} parent=1 // pred_fallthru
      _
    // Predicated region
    $region14: #{tpu_custom_call.1} parent=1 // pred_check
      _
    $region15: #{tpu_custom_call.1} parent=1 // pred_check_branch
      %36 = sbr.rel (0) target = $region17
    $region16: #{tpu_custom_call.1} parent=1 // pred_region
      %37 = dma.done [#allocation4], 256
    $region17: #{tpu_custom_call.1} parent=1 // pred_fallthru
      _
    %38 = vsyncpa [#allocation3], 1
    %39 = vsyncpa [#allocation4], 1

</llo_original>
